<compile_context>
chip_gen: v7x
topology: tpu7x:2x2x1
jax: 0.10.0
libtpu: 0.0.40
codegen_flags: <defaults>
</compile_context>

<pallas_src>
import functools

import jax
import jax.numpy as jnp
from jax.experimental import pallas as pl
from jax.experimental.pallas import tpu as pltpu

LEAKY_SLOPE = 0.01   # PyTorch nn.LeakyReLU default negative_slope
LANE = 128


def _leaky_relu(x):
    return jnp.where(x > 0, x, LEAKY_SLOPE * x)


def _softplus(x):
    # numerically stable softplus: max(x,0) + log1p(exp(-|x|))
    return jnp.maximum(x, 0.0) + jnp.log1p(jnp.exp(-jnp.abs(x)))


def _round_up(n, m):
    return ((n + m - 1) // m) * m


def _actor_critic_kernel(x_ref,
                         w1_ref, b1_ref,
                         w2_ref, b2_ref,
                         wh_ref, bh_ref,
                         out_ref, *, n_dim):
    # x_ref: f32 [TB, obs_dim] (cast to bf16 here, not in the wrapper);
    # weights bf16, biases f32; f32 accumulation on the MXU, f32 VPU/EUP math.
    x = x_ref[...].astype(jnp.bfloat16)
    h1 = jnp.dot(x, w1_ref[...], preferred_element_type=jnp.float32)
    h1 = _leaky_relu(h1 + b1_ref[...])
    h2 = jnp.dot(h1.astype(jnp.bfloat16), w2_ref[...],
                 preferred_element_type=jnp.float32)
    h2 = _leaky_relu(h2 + b2_ref[...])
    # fused actor+critic head: lanes [0,n) = mean, [n,2n) = pre-softplus std,
    # lane 2n = value, remaining lanes are zero padding.
    head = jnp.dot(h2.astype(jnp.bfloat16), wh_ref[...],
                   preferred_element_type=jnp.float32) + bh_ref[...]
    lane = jax.lax.broadcasted_iota(jnp.int32, head.shape, dimension=1)
    is_std = jnp.logical_and(lane >= n_dim, lane < 2 * n_dim)
    out_ref[...] = jnp.where(is_std, _softplus(head), head).astype(out_ref.dtype)


def actor_critic_forward(x, params, n_dim, *, batch_tile=512,
                         out_dtype=jnp.bfloat16):
    """Fused ActorCritic forward. Returns (action_mean, action_std, value) as f32."""
    B, obs_dim = x.shape
    OUT_PAD = params["wh"].shape[1]

    # Tile size: multiple of 16 (bf16 sublane packing, unmasked stores), capped so
    # the grid has >=2 blocks when possible (v7x: 2 TCs share the "parallel" axis).
    batch_tile = max(16, _round_up(int(batch_tile), 16))
    half = _round_up(pl.cdiv(B, 2), 16)
    TB = min(batch_tile, half)
    n_blocks = pl.cdiv(B, TB)
    B_grid = n_blocks * TB

    # Pad only the batch dim, and only when the tile doesn't divide B.
    # Rows are independent, so padded rows are garbage-but-harmless and sliced off.
    x_in = x if B_grid == B else jnp.pad(x, ((0, B_grid - B), (0, 0)))

    const = lambda i: (0, 0)   # weights/biases: VMEM-resident across the batch grid

    out = pl.pallas_call(
        functools.partial(_actor_critic_kernel, n_dim=n_dim),
        out_shape=jax.ShapeDtypeStruct((B_grid, OUT_PAD), out_dtype),
        grid_spec=pltpu.PrefetchScalarGridSpec(
            num_scalar_prefetch=0,
            grid=(n_blocks,),
            in_specs=[
                # last dim == full array dim, so <128 lanes is legal here
                pl.BlockSpec((TB, obs_dim), lambda i: (i, 0)),      # x tile (f32)
                pl.BlockSpec(params["w1"].shape, const),
                pl.BlockSpec(params["b1"].shape, const),
                pl.BlockSpec(params["w2"].shape, const),
                pl.BlockSpec(params["b2"].shape, const),
                pl.BlockSpec(params["wh"].shape, const),
                pl.BlockSpec(params["bh"].shape, const),
            ],
            out_specs=pl.BlockSpec((TB, OUT_PAD), lambda i: (i, 0)),
        ),
        compiler_params=pltpu.CompilerParams(
            dimension_semantics=("parallel",)),
    )(x_in,
      params["w1"], params["b1"],
      params["w2"], params["b2"],
      params["wh"], params["bh"])

    mean = out[:B, :n_dim].astype(jnp.float32)
    std = out[:B, n_dim:2 * n_dim].astype(jnp.float32)
    val = out[:B, 2 * n_dim:2 * n_dim + 1].astype(jnp.float32)
    return mean, std, val


def _normc_init(key, shape, std=0.001):
    # normc_initializer: sample N(0,1), normalize per output column, scale by std.
    w = jax.random.normal(key, shape, dtype=jnp.float32)
    norm = jnp.sqrt(jnp.sum(w * w, axis=0, keepdims=True))
    return std * w / norm


def make_params(key, obs_dim, embed_dim, n_dim, out_dim=2):
    """Returns (kernel_params, f32_master_params)."""
    k = jax.random.split(key, 8)
    h1 = embed_dim * 2
    nh = out_dim * n_dim
    EMB_PAD = _round_up(embed_dim, LANE)
    OUT_PAD = _round_up(max(nh + 1, LANE), LANE)

    # backbone linears: small deterministic normals (LazyLinear stand-in)
    w1 = jax.random.normal(k[0], (obs_dim, h1), jnp.float32) / jnp.sqrt(obs_dim)
    b1 = jax.random.normal(k[1], (1, h1), jnp.float32) * 0.01
    w2 = jax.random.normal(k[2], (h1, embed_dim), jnp.float32) / jnp.sqrt(h1)
    b2 = jax.random.normal(k[3], (1, embed_dim), jnp.float32) * 0.01
    # heads: normc_initializer(0.001) weights
    wf = _normc_init(k[4], (embed_dim, nh), std=0.001)
    bf = jax.random.normal(k[5], (1, nh), jnp.float32) * 0.01
    wv = _normc_init(k[6], (embed_dim, 1), std=0.001)
    bv = jax.random.normal(k[7], (1, 1), jnp.float32) * 0.01

    # f32 master params (true PyTorch semantics) for reference validation.
    f32_params = dict(w1=w1, b1=b1, w2=w2, b2=b2, wf=wf, bf=bf, wv=wv, bv=bv)

    # Kernel params: embed lanes zero-padded to 128 (lane-dense h2, head K=128);
    # actor + critic heads fused into one lane-dense [EMB_PAD, OUT_PAD] matrix.
    w2p = jnp.zeros((h1, EMB_PAD), jnp.float32).at[:, :embed_dim].set(w2)
    b2p = jnp.zeros((1, EMB_PAD), jnp.float32).at[:, :embed_dim].set(b2)
    wh = jnp.zeros((EMB_PAD, OUT_PAD), jnp.float32)
    wh = wh.at[:embed_dim, :nh].set(wf).at[:embed_dim, nh:nh + 1].set(wv)
    bh = jnp.zeros((1, OUT_PAD), jnp.float32)
    bh = bh.at[:, :nh].set(bf).at[:, nh:nh + 1].set(bv)

    kernel_params = dict(
        w1=w1.astype(jnp.bfloat16), b1=b1,
        w2=w2p.astype(jnp.bfloat16), b2=b2p,
        wh=wh.astype(jnp.bfloat16), bh=bh,
    )
    return kernel_params, f32_params


def _reference_forward_f32(x, fp, n_dim):
    # plain-JAX, full f32 reference (PyTorch semantics)
    h1 = _leaky_relu(x @ fp["w1"] + fp["b1"])
    h2 = _leaky_relu(h1 @ fp["w2"] + fp["b2"])
    act = h2 @ fp["wf"] + fp["bf"]
    val = h2 @ fp["wv"] + fp["bv"]
    mean = act[:, :n_dim]
    std = _softplus(act[:, n_dim:])
    return mean, std, val


if __name__ == "__main__":
    key = jax.random.PRNGKey(0)
    B, OBS_DIM, EMBED_DIM, N_DIM = 2, 32, 64, 6  # embed_dim=64 per ActorCritic.__init__

    k_x, k_p = jax.random.split(key)
    x = jax.random.normal(k_x, (B, OBS_DIM), dtype=jnp.float32)
    params, f32_params = make_params(k_p, OBS_DIM, EMBED_DIM, N_DIM)

    mean, std, val = actor_critic_forward(x, params, N_DIM)
    jax.block_until_ready((mean, std, val))

    # validate against the true f32 reference (kernel uses bf16 operands + bf16 output,
    # so tolerances account for ~3 lost mantissa bits on O(1) activations).
    r_mean, r_std, r_val = _reference_forward_f32(x, f32_params, N_DIM)
    assert mean.shape == (B, N_DIM) and std.shape == (B, N_DIM) and val.shape == (B, 1)
    assert jnp.allclose(mean, r_mean, atol=1e-2, rtol=5e-2)
    assert jnp.allclose(std, r_std, atol=1e-2, rtol=5e-2)
    assert jnp.allclose(val, r_val, atol=1e-2, rtol=5e-2)

    print("KERNEL_OK")
</pallas_src>

<mosaic_0001>
module attributes {stable_mosaic.version = 11 : i64} {
  func.func @_actor_critic_kernel(%arg0: i32, %arg1: memref<16x32xf32, #tpu.memory_space<vmem>>, %arg2: memref<32x128xbf16, #tpu.memory_space<vmem>>, %arg3: memref<1x128xf32, #tpu.memory_space<vmem>>, %arg4: memref<128x128xbf16, #tpu.memory_space<vmem>>, %arg5: memref<1x128xf32, #tpu.memory_space<vmem>>, %arg6: memref<128x128xbf16, #tpu.memory_space<vmem>>, %arg7: memref<1x128xf32, #tpu.memory_space<vmem>>, %arg8: memref<16x128xbf16, #tpu.memory_space<vmem>>) attributes {dimension_semantics = [#tpu.dimension_semantics<parallel>], iteration_bounds = array<i64: 1>, scalar_prefetch = 0 : i64, scratch_operands = 0 : i64, tpu.core_type = #tpu.core_type<tc>, window_params = [{transform_indices = @transform_0, window_bounds = array<i64: 16, 32>}, {pipeline_mode = #tpu.pipeline_mode<synchronous>, transform_indices = @transform_1, window_bounds = array<i64: 32, 128>}, {pipeline_mode = #tpu.pipeline_mode<synchronous>, transform_indices = @transform_2, window_bounds = array<i64: 1, 128>}, {pipeline_mode = #tpu.pipeline_mode<synchronous>, transform_indices = @transform_3, window_bounds = array<i64: 128, 128>}, {pipeline_mode = #tpu.pipeline_mode<synchronous>, transform_indices = @transform_4, window_bounds = array<i64: 1, 128>}, {pipeline_mode = #tpu.pipeline_mode<synchronous>, transform_indices = @transform_5, window_bounds = array<i64: 128, 128>}, {pipeline_mode = #tpu.pipeline_mode<synchronous>, transform_indices = @transform_6, window_bounds = array<i64: 1, 128>}, {transform_indices = @transform_7, window_bounds = array<i64: 16, 128>}]} {
    %c0 = arith.constant 0 : index
    %c0_0 = arith.constant 0 : index
    %0 = vector.load %arg1[%c0, %c0_0] : memref<16x32xf32, #tpu.memory_space<vmem>>, vector<16x32xf32>
    %1 = arith.truncf %0 : vector<16x32xf32> to vector<16x32xbf16>
    %c0_1 = arith.constant 0 : index
    %c0_2 = arith.constant 0 : index
    %2 = vector.load %arg2[%c0_1, %c0_2] : memref<32x128xbf16, #tpu.memory_space<vmem>>, vector<32x128xbf16>
    %cst = arith.constant dense<0.000000e+00> : vector<16x128xf32>
    %3 = tpu.matmul %1, %2, %cst {dimension_numbers = #tpu.dot_dimension_numbers<[1], [0], [0], [1], [0, 0, 1, 1], [], []>} : vector<16x32xbf16>, vector<32x128xbf16>, vector<16x128xf32> -> vector<16x128xf32>
    %c0_3 = arith.constant 0 : index
    %c0_4 = arith.constant 0 : index
    %4 = vector.load %arg3[%c0_3, %c0_4] : memref<1x128xf32, #tpu.memory_space<vmem>>, vector<1x128xf32>
    %5 = vector.broadcast %4 : vector<1x128xf32> to vector<16x128xf32>
    %6 = arith.addf %3, %5 : vector<16x128xf32>
    %cst_5 = arith.constant 0.000000e+00 : f32
    %7 = vector.broadcast %cst_5 : f32 to vector<16x128xf32>
    %8 = arith.cmpf ogt, %6, %7 : vector<16x128xf32>
    %cst_6 = arith.constant 0.00999999977 : f32
    %9 = vector.broadcast %cst_6 : f32 to vector<16x128xf32>
    %10 = arith.mulf %9, %6 : vector<16x128xf32>
    %11 = arith.select %8, %6, %10 : vector<16x128xi1>, vector<16x128xf32>
    %12 = arith.truncf %11 : vector<16x128xf32> to vector<16x128xbf16>
    %c0_7 = arith.constant 0 : index
    %c0_8 = arith.constant 0 : index
    %13 = vector.load %arg4[%c0_7, %c0_8] : memref<128x128xbf16, #tpu.memory_space<vmem>>, vector<128x128xbf16>
    %cst_9 = arith.constant dense<0.000000e+00> : vector<16x128xf32>
    %14 = tpu.matmul %12, %13, %cst_9 {dimension_numbers = #tpu.dot_dimension_numbers<[1], [0], [0], [1], [0, 0, 1, 1], [], []>} : vector<16x128xbf16>, vector<128x128xbf16>, vector<16x128xf32> -> vector<16x128xf32>
    %c0_10 = arith.constant 0 : index
    %c0_11 = arith.constant 0 : index
    %15 = vector.load %arg5[%c0_10, %c0_11] : memref<1x128xf32, #tpu.memory_space<vmem>>, vector<1x128xf32>
    %16 = vector.broadcast %15 : vector<1x128xf32> to vector<16x128xf32>
    %17 = arith.addf %14, %16 : vector<16x128xf32>
    %cst_12 = arith.constant 0.000000e+00 : f32
    %18 = vector.broadcast %cst_12 : f32 to vector<16x128xf32>
    %19 = arith.cmpf ogt, %17, %18 : vector<16x128xf32>
    %cst_13 = arith.constant 0.00999999977 : f32
    %20 = vector.broadcast %cst_13 : f32 to vector<16x128xf32>
    %21 = arith.mulf %20, %17 : vector<16x128xf32>
    %22 = arith.select %19, %17, %21 : vector<16x128xi1>, vector<16x128xf32>
    %23 = arith.truncf %22 : vector<16x128xf32> to vector<16x128xbf16>
    %c0_14 = arith.constant 0 : index
    %c0_15 = arith.constant 0 : index
    %24 = vector.load %arg6[%c0_14, %c0_15] : memref<128x128xbf16, #tpu.memory_space<vmem>>, vector<128x128xbf16>
    %cst_16 = arith.constant dense<0.000000e+00> : vector<16x128xf32>
    %25 = tpu.matmul %23, %24, %cst_16 {dimension_numbers = #tpu.dot_dimension_numbers<[1], [0], [0], [1], [0, 0, 1, 1], [], []>} : vector<16x128xbf16>, vector<128x128xbf16>, vector<16x128xf32> -> vector<16x128xf32>
    %c0_17 = arith.constant 0 : index
    %c0_18 = arith.constant 0 : index
    %26 = vector.load %arg7[%c0_17, %c0_18] : memref<1x128xf32, #tpu.memory_space<vmem>>, vector<1x128xf32>
    %27 = vector.broadcast %26 : vector<1x128xf32> to vector<16x128xf32>
    %28 = arith.addf %25, %27 : vector<16x128xf32>
    %29 = tpu.iota {dimensions = array<i32: 1>} : vector<16x128xi32>
    %c6_i32 = arith.constant 6 : i32
    %30 = vector.broadcast %c6_i32 : i32 to vector<16x128xi32>
    %31 = arith.cmpi sge, %29, %30 : vector<16x128xi32>
    %c12_i32 = arith.constant 12 : i32
    %32 = vector.broadcast %c12_i32 : i32 to vector<16x128xi32>
    %33 = arith.cmpi slt, %29, %32 : vector<16x128xi32>
    %34 = arith.andi %31, %33 : vector<16x128xi1>
    %cst_19 = arith.constant 0.000000e+00 : f32
    %35 = vector.broadcast %cst_19 : f32 to vector<16x128xf32>
    %36 = arith.maximumf %28, %35 : vector<16x128xf32>
    %37 = math.absf %28 : vector<16x128xf32>
    %cst_20 = arith.constant 0.000000e+00 : f32
    %38 = vector.broadcast %cst_20 : f32 to vector<16x128xf32>
    %39 = arith.subf %38, %37 : vector<16x128xf32>
    %40 = math.exp %39 : vector<16x128xf32>
    %41 = math.log1p %40 : vector<16x128xf32>
    %42 = arith.addf %36, %41 : vector<16x128xf32>
    %43 = arith.select %34, %42, %28 : vector<16x128xi1>, vector<16x128xf32>
    %44 = arith.truncf %43 : vector<16x128xf32> to vector<16x128xbf16>
    %c0_21 = arith.constant 0 : index
    %c0_22 = arith.constant 0 : index
    %45 = vector.load %arg8[%c0_21, %c0_22] : memref<16x128xbf16, #tpu.memory_space<vmem>>, vector<16x128xbf16>
    tpu.vector_store %arg8[%c0_21, %c0_22], %44 {strides = array<i32>} : memref<16x128xbf16, #tpu.memory_space<vmem>>, vector<16x128xbf16>,
    return
  }
  func.func @transform_0(%arg0: i32) -> (i32, i32) {
    %c0_i32 = arith.constant 0 : i32
    %c0_i32_0 = arith.constant 0 : i32
    return %arg0, %c0_i32 : i32, i32
  }
  func.func @transform_1(%arg0: i32) -> (i32, i32) {
    %c0_i32 = arith.constant 0 : i32
    %c0_i32_0 = arith.constant 0 : i32
    %c0_i32_1 = arith.constant 0 : i32
    return %c0_i32, %c0_i32_0 : i32, i32
  }
  func.func @transform_2(%arg0: i32) -> (i32, i32) {
    %c0_i32 = arith.constant 0 : i32
    %c0_i32_0 = arith.constant 0 : i32
    %c0_i32_1 = arith.constant 0 : i32
    return %c0_i32, %c0_i32_0 : i32, i32
  }
  func.func @transform_3(%arg0: i32) -> (i32, i32) {
    %c0_i32 = arith.constant 0 : i32
    %c0_i32_0 = arith.constant 0 : i32
    %c0_i32_1 = arith.constant 0 : i32
    return %c0_i32, %c0_i32_0 : i32, i32
  }
  func.func @transform_4(%arg0: i32) -> (i32, i32) {
    %c0_i32 = arith.constant 0 : i32
    %c0_i32_0 = arith.constant 0 : i32
    %c0_i32_1 = arith.constant 0 : i32
    return %c0_i32, %c0_i32_0 : i32, i32
  }
  func.func @transform_5(%arg0: i32) -> (i32, i32) {
    %c0_i32 = arith.constant 0 : i32
    %c0_i32_0 = arith.constant 0 : i32
    %c0_i32_1 = arith.constant 0 : i32
    return %c0_i32, %c0_i32_0 : i32, i32
  }
  func.func @transform_6(%arg0: i32) -> (i32, i32) {
    %c0_i32 = arith.constant 0 : i32
    %c0_i32_0 = arith.constant 0 : i32
    %c0_i32_1 = arith.constant 0 : i32
    return %c0_i32, %c0_i32_0 : i32, i32
  }
  func.func @transform_7(%arg0: i32) -> (i32, i32) {
    %c0_i32 = arith.constant 0 : i32
    %c0_i32_0 = arith.constant 0 : i32
    return %arg0, %c0_i32 : i32, i32
  }
}

</mosaic_0001>

<llo_original>
// kernel: tpu_custom_call.1
$region0: #{tpu_custom_call.1}
  #allocation0 [shape = 'u32[]', space=smem, size = 0x4, offset = 0x4, fixed_abs, tag = 'smem constant byte address 0x4 - core index']
  #allocation1 [shape = 'u32[144,128]{1,0:T(1,128)}', space=vmem, size = 0x12000, scoped, tag = 'internal scratch']
  %s0 = inlined_call_operand.hbm [shape: f32[16,32], index: 0, kind: input, shape index: {}]
  %s1 = inlined_call_operand.hbm [shape: bf16[32,128], index: 1, kind: input, shape index: {}]
  %s2 = inlined_call_operand.vmem [shape: f32[1,128], index: 2, kind: input, shape index: {}]
  %s3 = inlined_call_operand.hbm [shape: bf16[128,128], index: 3, kind: input, shape index: {}]
  %s4 = inlined_call_operand.vmem [shape: f32[1,128], index: 4, kind: input, shape index: {}]
  %s5 = inlined_call_operand.hbm [shape: bf16[128,128], index: 5, kind: input, shape index: {}]
  %s6 = inlined_call_operand.vmem [shape: f32[1,128], index: 6, kind: input, shape index: {}]
  %s7 = inlined_call_operand.hbm [shape: bf16[16,128], index: 7, kind: output, shape index: {}]
  %s8 = sld [smem:[#allocation0]]
  $region54: #{tpu_custom_call.1} parent=0
    _
  %s10 = ssub.s32 1, %s8
  %s11 = scalar_select 0, %s10, %s8
  $region1: #{tpu_custom_call.1} parent=0
    #allocation2 [shape = 'u8[8192]{0}', space=vmem, size = 0x2000, scoped, tag = 'input window, operand 0, single buffered']
    #allocation3 [shape = 's32[1]{0}', space=sflag, size = 0x4, scoped, tag = 'scoped memory for tpu_custom_call.1']
    #allocation4 [shape = 's32[1]{0}', space=sflag, size = 0x4, scoped, tag = 'scoped memory for tpu_custom_call.1']
    #allocation5 [shape = 'u8[8192]{0}', space=vmem, size = 0x2000, scoped, tag = 'input window, operand 1, single buffered']
    #allocation6 [shape = 's32[1]{0}', space=sflag, size = 0x4, scoped, tag = 'scoped memory for tpu_custom_call.1']
    #allocation7 [shape = 'u8[32768]{0}', space=vmem, size = 0x8000, scoped, tag = 'input window, operand 3, single buffered']
    #allocation8 [shape = 'u8[32768]{0}', space=vmem, size = 0x8000, scoped, tag = 'input window, operand 5, single buffered']
    #allocation9 [shape = 's32[1]{0}', space=sflag, size = 0x4, scoped, tag = 'scoped memory for tpu_custom_call.1']
    #allocation10 [shape = 'u8[4096]{0}', space=vmem, size = 0x1000, scoped, tag = 'output window, operand 0, single buffered']
    %12 = vsyncpa [#allocation3], 0
    %13 = vsyncpa [#allocation6], 0
    %14 = vsyncpa [#allocation9], 0
    %15 = vsyncpa [#allocation4], 0
    // Predicated region
    $region2: #{tpu_custom_call.1} parent=1 // pred_check
      _
    $region3: #{tpu_custom_call.1} parent=1 // pred_check_branch
      %17 = sbr.rel (0) target = $region5
    $region4: #{tpu_custom_call.1} parent=1 // pred_region
      %s19 = ssub.s32 256, 256
      %20 = vsyncadd [#allocation3], %s19
      %s21 = sshll.u32 [#allocation2], 4
      %s22 = int_to_ptr.vmem [resolvable:$true] %s21
      %27 = dma.hbm_to_vmem [thread:$0]  %s0, 256, %s22, [#allocation3], 128, 128, 8
    $region5: #{tpu_custom_call.1} parent=1 // pred_fallthru
      _
    // Predicated region
    $region6: #{tpu_custom_call.1} parent=1 // pred_check
      _
    $region7: #{tpu_custom_call.1} parent=1 // pred_check_branch
      %29 = sbr.rel (0) target = $region9
    $region8: #{tpu_custom_call.1} parent=1 // pred_region
      %s31 = ssub.s32 256, 256
      %32 = vsyncadd [#allocation6], %s31
      %s33 = sshll.u32 [#allocation5], 4
      %s34 = int_to_ptr.vmem [resolvable:$true] %s33
      %39 = dma.hbm_to_vmem [thread:$0]  %s1, 256, %s34, [#allocation6], 64, 64, 4
    $region9: #{tpu_custom_call.1} parent=1 // pred_fallthru
      _
    // Predicated region
    $region10: #{tpu_custom_call.1} parent=1 // pred_check
      _
    $region11: #{tpu_custom_call.1} parent=1 // pred_check_branch
      %41 = sbr.rel (0) target = $region13
    $region12: #{tpu_custom_call.1} parent=1 // pred_region
      _
    $region13: #{tpu_custom_call.1} parent=1 // pred_fallthru
      _
    // Predicated region
    $region14: #{tpu_custom_call.1} parent=1 // pred_check
      _
    $region15: #{tpu_custom_call.1} parent=1 // pred_check_branch
      %43 = sbr.rel (0) target = $region17
    $region16: #{tpu_custom_call.1} parent=1 // pred_region
      %s45 = ssub.s32 1024, 1024
      %46 = vsyncadd [#allocation6], %s45
      %s47 = sshll.u32 [#allocation7], 4
      %s48 = int_to_ptr.vmem [resolvable:$true] %s47
      %53 = dma.hbm_to_vmem [thread:$0]  %s3, 1024, %s48, [#allocation6], 64, 64, 4
    $region17: #{tpu_custom_call.1} parent=1 // pred_fallthru
      _
    // Predicated region
    $region18: #{tpu_custom_call.1} parent=1 // pred_check
      _
    $region19: #{tpu_custom_call.1} parent=1 // pred_check_branch
      %55 = sbr.rel (0) target = $region21
    $region20: #{tpu_custom_call.1} parent=1 // pred_region
      _
    $region21: #{tpu_custom_call.1} parent=1 // pred_fallthru
      _
    // Predicated region
    $region22: #{tpu_custom_call.1} parent=1 // pred_check
      _
    $region23: #{tpu_custom_call.1} parent=1 // pred_check_branch
      %57 = sbr.rel (0) target = $region25
    $region24: #{tpu_custom_call.1} parent=1 // pred_region
      %s59 = ssub.s32 1024, 1024
      %60 = vsyncadd [#allocation9], %s59
      %s61 = sshll.u32 [#allocation8], 4
      %s62 = int_to_ptr.vmem [resolvable:$true] %s61
      %67 = dma.hbm_to_vmem [thread:$0]  %s5, 1024, %s62, [#allocation9], 64, 64, 4
    $region25: #{tpu_custom_call.1} parent=1 // pred_fallthru
      _
    // Predicated region
    $region26: #{tpu_custom_call.1} parent=1 // pred_check
      _
    $region27: #{tpu_custom_call.1} parent=1 // pred_check_branch
      %69 = sbr.rel (0) target = $region29
    $region28: #{tpu_custom_call.1} parent=1 // pred_region
      _
    $region29: #{tpu_custom_call.1} parent=1 // pred_fallthru
      _
    // Predicated region
    $region30: #{tpu_custom_call.1} parent=1 // pred_check
      _
    $region31: #{tpu_custom_call.1} parent=1 // pred_check_branch
      %71 = sbr.rel (0) target = $region33
    $region32: #{tpu_custom_call.1} parent=1 // pred_region
      %72 = dma.done [#allocation3], 256
    $region33: #{tpu_custom_call.1} parent=1 // pred_fallthru
      _
    // Predicated region
    $region34: #{tpu_custom_call.1} parent=1 // pred_check
      _
    $region35: #{tpu_custom_call.1} parent=1 // pred_check_branch
      %74 = sbr.rel (0) target = $region37
    $region36: #{tpu_custom_call.1} parent=1 // pred_region
      %75 = dma.done [#allocation6], 256
    $region37: #{tpu_custom_call.1} parent=1 // pred_fallthru
      _
    // Predicated region
    $region38: #{tpu_custom_call.1} parent=1 // pred_check
      _
    $region39: #{tpu_custom_call.1} parent=1 // pred_check_branch
      %77 = sbr.rel (0) target = $region41
    $region40: #{tpu_custom_call.1} parent=1 // pred_region
      %78 = dma.done [#allocation6], 1024
    $region41: #{tpu_custom_call.1} parent=1 // pred_fallthru
      _
    // Predicated region
    $region42: #{tpu_custom_call.1} parent=1 // pred_check
      _
    $region43: #{tpu_custom_call.1} parent=1 // pred_check_branch
      %80 = sbr.rel (0) target = $region45
    $region44: #{tpu_custom_call.1} parent=1 // pred_region
      %81 = dma.done [#allocation9], 1024
    $region45: #{tpu_custom_call.1} parent=1 // pred_fallthru
      _
    %v83 = vld [vmem:[#allocation2] sm:$0xff]
    %v84 = vld [vmem:[#allocation2 + $0x8] sm:$0xff]
    %v85 = vpack.c.bf16 %v84, %v83
    %v86 = vld [vmem:[#allocation5] sm:$0xf]
    %v87 = vld [vmem:[#allocation5 + $0x4] sm:$0xf]
    %v88 = vld [vmem:[#allocation5 + $0x8] sm:$0xf]
    %v89 = vld [vmem:[#allocation5 + $0xc] sm:$0xf]
    %v90 = vld [vmem:[%s2] sm:$0x1]
    %v92 = vlaneseq
    %v93 = vshrl.u32 %v92, 7
    %v94 = vsub.s32 0, %v93
    %v95 = vrot.slane %v90, %v94
    %v101 = vunpack.c.l.b16 %v86
    %v102 = vunpack.c.l.b16 %v87
    %v103 = vunpack.c.l.b16 %v88
    %v104 = vunpack.c.l.b16 %v89
    %v105 = vpack.c.b16 %v102, %v101
    %v106 = vpack.c.b16 %v104, %v103
    %vm109 = vcmask 261120
    %v111 = vsel %vm109, %v85, 0
    %113 = vmatprep.subr.bf16.mxu0 0
    %114 = vmatpush1.bf16.msra.mxu0 %v105
    %115 = vmatprep.subr.bf16.mxu0 0
    %116 = vmatpush1.bf16.msra.mxu0 %v106
    %117 = vmatprep.subr.bf16.mxu0 0
    %118 = vmatpush1.bf16.msra.mxu0 0
    %119 = vmatprep.subr.bf16.mxu0 0
    %120 = vmatpush1.bf16.msra.mxu0 0
    %121 = vmatprep.subr.bf16.mxu0 0
    %122 = vmatpush1.bf16.msra.mxu0 0
    %123 = vmatprep.subr.bf16.mxu0 0
    %124 = vmatpush1.bf16.msra.mxu0 0
    %125 = vmatprep.subr.bf16.mxu0 0
    %126 = vmatpush1.bf16.msra.mxu0 0
    %127 = vmatprep.subr.bf16.mxu0 0
    %128 = vmatpush1.bf16.msra.mxu0 0
    %129 = vmatprep.subr.bf16.mxu0 0
    %130 = vmatpush1.bf16.msra.mxu0 0
    %131 = vmatprep.subr.bf16.mxu0 0
    %132 = vmatpush1.bf16.msra.mxu0 0
    %133 = vmatprep.subr.bf16.mxu0 0
    %134 = vmatpush1.bf16.msra.mxu0 0
    %135 = vmatprep.subr.bf16.mxu0 0
    %136 = vmatpush1.bf16.msra.mxu0 0
    %137 = vmatprep.subr.bf16.mxu0 0
    %138 = vmatpush1.bf16.msra.mxu0 0
    %139 = vmatprep.subr.bf16.mxu0 0
    %140 = vmatpush1.bf16.msra.mxu0 0
    %141 = vmatprep.subr.bf16.mxu0 0
    %142 = vmatpush1.bf16.msra.mxu0 0
    %143 = vmatprep.subr.bf16.mxu0 0
    %144 = vmatpush1.bf16.msra.mxu0 0
    %145 = vmatprep.mubr.bf16.mxu0 0
    %146 = vmatmul.mubr.bf16.gmra.mrb[0].mxu0 %v111
    %v147 = vpop.f32.mrb[0].mxu0
    %v148 = vadd.f32 %v95, %v147
    %v149 = vpop.f32.mrb[0].mxu0
    %v150 = vpop.f32.mrb[0].mxu0
    %v151 = vadd.f32 %v95, %v150
    %v152 = vpop.f32.mrb[0].mxu0
    %153 = vdwg.mxu0
    %vm154 = vcmp.gt.f32.partialorder %v148, 0.0
    %vm155 = vcmp.gt.f32.partialorder %v151, 0.0
    %v156 = vmul.f32 %v148, 0.01
    %v157 = vmul.f32 %v151, 0.01
    %v158 = vsel %vm154, %v148, %v156
    %v159 = vsel %vm155, %v151, %v157
    %v160 = vpack.c.bf16 %v159, %v158
    %v161 = vld [vmem:[#allocation7] sm:$0xf]
    %v162 = vld [vmem:[#allocation7 + $0x4] sm:$0xf]
    %v163 = vld [vmem:[#allocation7 + $0x8] sm:$0xf]
    %v164 = vld [vmem:[#allocation7 + $0xc] sm:$0xf]
    %v165 = vld [vmem:[#allocation7 + $0x10] sm:$0xf]
    %v166 = vld [vmem:[#allocation7 + $0x14] sm:$0xf]
    %v167 = vld [vmem:[#allocation7 + $0x18] sm:$0xf]
    %v168 = vld [vmem:[#allocation7 + $0x1c] sm:$0xf]
    %v169 = vld [vmem:[#allocation7 + $0x20] sm:$0xf]
    %v170 = vld [vmem:[#allocation7 + $0x24] sm:$0xf]
    %v171 = vld [vmem:[#allocation7 + $0x28] sm:$0xf]
    %v172 = vld [vmem:[#allocation7 + $0x2c] sm:$0xf]
    %v173 = vld [vmem:[#allocation7 + $0x30] sm:$0xf]
    %v174 = vld [vmem:[#allocation7 + $0x34] sm:$0xf]
    %v175 = vld [vmem:[#allocation7 + $0x38] sm:$0xf]
    %v176 = vld [vmem:[#allocation7 + $0x3c] sm:$0xf]
    %v177 = vld [vmem:[%s4] sm:$0x1]
    %v179 = vlaneseq
    %v180 = vshrl.u32 %v179, 7
    %v181 = vsub.s32 0, %v180
    %v182 = vrot.slane %v177, %v181
    %v200 = vunpack.c.l.b16 %v161
    %v201 = vunpack.c.l.b16 %v162
    %v202 = vunpack.c.l.b16 %v163
    %v203 = vunpack.c.l.b16 %v164
    %v204 = vunpack.c.l.b16 %v165
    %v205 = vunpack.c.l.b16 %v166
    %v206 = vunpack.c.l.b16 %v167
    %v207 = vunpack.c.l.b16 %v168
    %v208 = vunpack.c.l.b16 %v169
    %v209 = vunpack.c.l.b16 %v170
    %v210 = vunpack.c.l.b16 %v171
    %v211 = vunpack.c.l.b16 %v172
    %v212 = vunpack.c.l.b16 %v173
    %v213 = vunpack.c.l.b16 %v174
    %v214 = vunpack.c.l.b16 %v175
    %v215 = vunpack.c.l.b16 %v176
    %v216 = vpack.c.b16 %v201, %v200
    %v217 = vpack.c.b16 %v203, %v202
    %v218 = vpack.c.b16 %v205, %v204
    %v219 = vpack.c.b16 %v207, %v206
    %v220 = vpack.c.b16 %v209, %v208
    %v221 = vpack.c.b16 %v211, %v210
    %v222 = vpack.c.b16 %v213, %v212
    %v223 = vpack.c.b16 %v215, %v214
    %232 = vmatprep.subr.bf16.mxu0 0
    %233 = vmatpush1.bf16.msra.mxu0 %v216
    %234 = vmatprep.subr.bf16.mxu0 0
    %235 = vmatpush1.bf16.msra.mxu0 %v217
    %236 = vmatprep.subr.bf16.mxu0 0
    %237 = vmatpush1.bf16.msra.mxu0 %v218
    %238 = vmatprep.subr.bf16.mxu0 0
    %239 = vmatpush1.bf16.msra.mxu0 %v219
    %240 = vmatprep.subr.bf16.mxu0 0
    %241 = vmatpush1.bf16.msra.mxu0 %v220
    %242 = vmatprep.subr.bf16.mxu0 0
    %243 = vmatpush1.bf16.msra.mxu0 %v221
    %244 = vmatprep.subr.bf16.mxu0 0
    %245 = vmatpush1.bf16.msra.mxu0 %v222
    %246 = vmatprep.subr.bf16.mxu0 0
    %247 = vmatpush1.bf16.msra.mxu0 %v223
    %248 = vmatprep.subr.bf16.mxu0 0
    %249 = vmatpush1.bf16.msra.mxu0 0
    %250 = vmatprep.subr.bf16.mxu0 0
    %251 = vmatpush1.bf16.msra.mxu0 0
    %252 = vmatprep.subr.bf16.mxu0 0
    %253 = vmatpush1.bf16.msra.mxu0 0
    %254 = vmatprep.subr.bf16.mxu0 0
    %255 = vmatpush1.bf16.msra.mxu0 0
    %256 = vmatprep.subr.bf16.mxu0 0
    %257 = vmatpush1.bf16.msra.mxu0 0
    %258 = vmatprep.subr.bf16.mxu0 0
    %259 = vmatpush1.bf16.msra.mxu0 0
    %260 = vmatprep.subr.bf16.mxu0 0
    %261 = vmatpush1.bf16.msra.mxu0 0
    %262 = vmatprep.subr.bf16.mxu0 0
    %263 = vmatpush1.bf16.msra.mxu0 0
    %264 = vmatprep.mubr.bf16.mxu0 0
    %265 = vmatmul.mubr.bf16.gmra.mrb[0].mxu0 %v160
    %v266 = vpop.f32.mrb[0].mxu0
    %v267 = vadd.f32 %v182, %v266
    %v268 = vpop.f32.mrb[0].mxu0
    %v269 = vpop.f32.mrb[0].mxu0
    %v270 = vadd.f32 %v182, %v269
    %v271 = vpop.f32.mrb[0].mxu0
    %272 = vdwg.mxu0
    %vm273 = vcmp.gt.f32.partialorder %v267, 0.0
    %vm274 = vcmp.gt.f32.partialorder %v270, 0.0
    %v275 = vmul.f32 %v267, 0.01
    %v276 = vmul.f32 %v270, 0.01
    %v277 = vsel %vm273, %v267, %v275
    %v278 = vsel %vm274, %v270, %v276
    %v279 = vpack.c.bf16 %v278, %v277
    %v280 = vld [vmem:[#allocation8] sm:$0xf]
    %v281 = vld [vmem:[#allocation8 + $0x4] sm:$0xf]
    %v282 = vld [vmem:[#allocation8 + $0x8] sm:$0xf]
    %v283 = vld [vmem:[#allocation8 + $0xc] sm:$0xf]
    %v284 = vld [vmem:[#allocation8 + $0x10] sm:$0xf]
    %v285 = vld [vmem:[#allocation8 + $0x14] sm:$0xf]
    %v286 = vld [vmem:[#allocation8 + $0x18] sm:$0xf]
    %v287 = vld [vmem:[#allocation8 + $0x1c] sm:$0xf]
    %v288 = vld [vmem:[#allocation8 + $0x20] sm:$0xf]
    %v289 = vld [vmem:[#allocation8 + $0x24] sm:$0xf]
    %v290 = vld [vmem:[#allocation8 + $0x28] sm:$0xf]
    %v291 = vld [vmem:[#allocation8 + $0x2c] sm:$0xf]
    %v292 = vld [vmem:[#allocation8 + $0x30] sm:$0xf]
    %v293 = vld [vmem:[#allocation8 + $0x34] sm:$0xf]
    %v294 = vld [vmem:[#allocation8 + $0x38] sm:$0xf]
    %v295 = vld [vmem:[#allocation8 + $0x3c] sm:$0xf]
    %v296 = vld [vmem:[%s6] sm:$0x1]
    %v298 = vlaneseq
    %v299 = vshrl.u32 %v298, 7
    %v300 = vsub.s32 0, %v299
    %v301 = vrot.slane %v296, %v300
    %v319 = vunpack.c.l.b16 %v280
    %v320 = vunpack.c.l.b16 %v281
    %v321 = vunpack.c.l.b16 %v282
    %v322 = vunpack.c.l.b16 %v283
    %v323 = vunpack.c.l.b16 %v284
    %v324 = vunpack.c.l.b16 %v285
    %v325 = vunpack.c.l.b16 %v286
    %v326 = vunpack.c.l.b16 %v287
    %v327 = vunpack.c.l.b16 %v288
    %v328 = vunpack.c.l.b16 %v289
    %v329 = vunpack.c.l.b16 %v290
    %v330 = vunpack.c.l.b16 %v291
    %v331 = vunpack.c.l.b16 %v292
    %v332 = vunpack.c.l.b16 %v293
    %v333 = vunpack.c.l.b16 %v294
    %v334 = vunpack.c.l.b16 %v295
    %v335 = vpack.c.b16 %v320, %v319
    %v336 = vpack.c.b16 %v322, %v321
    %v337 = vpack.c.b16 %v324, %v323
    %v338 = vpack.c.b16 %v326, %v325
    %v339 = vpack.c.b16 %v328, %v327
    %v340 = vpack.c.b16 %v330, %v329
    %v341 = vpack.c.b16 %v332, %v331
    %v342 = vpack.c.b16 %v334, %v333
    %351 = vmatprep.subr.bf16.mxu0 0
    %352 = vmatpush1.bf16.msra.mxu0 %v335
    %353 = vmatprep.subr.bf16.mxu0 0
    %354 = vmatpush1.bf16.msra.mxu0 %v336
    %355 = vmatprep.subr.bf16.mxu0 0
    %356 = vmatpush1.bf16.msra.mxu0 %v337
    %357 = vmatprep.subr.bf16.mxu0 0
    %358 = vmatpush1.bf16.msra.mxu0 %v338
    %359 = vmatprep.subr.bf16.mxu0 0
    %360 = vmatpush1.bf16.msra.mxu0 %v339
    %361 = vmatprep.subr.bf16.mxu0 0
    %362 = vmatpush1.bf16.msra.mxu0 %v340
    %363 = vmatprep.subr.bf16.mxu0 0
    %364 = vmatpush1.bf16.msra.mxu0 %v341
    %365 = vmatprep.subr.bf16.mxu0 0
    %366 = vmatpush1.bf16.msra.mxu0 %v342
    %367 = vmatprep.subr.bf16.mxu0 0
    %368 = vmatpush1.bf16.msra.mxu0 0
    %369 = vmatprep.subr.bf16.mxu0 0
    %370 = vmatpush1.bf16.msra.mxu0 0
    %371 = vmatprep.subr.bf16.mxu0 0
    %372 = vmatpush1.bf16.msra.mxu0 0
    %373 = vmatprep.subr.bf16.mxu0 0
    %374 = vmatpush1.bf16.msra.mxu0 0
    %375 = vmatprep.subr.bf16.mxu0 0
    %376 = vmatpush1.bf16.msra.mxu0 0
    %377 = vmatprep.subr.bf16.mxu0 0
    %378 = vmatpush1.bf16.msra.mxu0 0
    %379 = vmatprep.subr.bf16.mxu0 0
    %380 = vmatpush1.bf16.msra.mxu0 0
    %381 = vmatprep.subr.bf16.mxu0 0
    %382 = vmatpush1.bf16.msra.mxu0 0
    %383 = vmatprep.mubr.bf16.mxu0 0
    %384 = vmatmul.mubr.bf16.gmra.mrb[0].mxu0 %v279
    %v385 = vpop.f32.mrb[0].mxu0
    %v386 = vadd.f32 %v301, %v385
    %v387 = vpop.f32.mrb[0].mxu0
    %v388 = vpop.f32.mrb[0].mxu0
    %v389 = vadd.f32 %v301, %v388
    %v390 = vpop.f32.mrb[0].mxu0
    %391 = vdwg.mxu0
    %v392 = vlaneseq
    %v393 = vand.u32 %v392, 127
    %vm394 = vcmp.ge.s32.totalorder %v393, 6
    %vm395 = vcmp.lt.s32.totalorder %v393, 12
    %vm396 = vmand %vm394, %vm395
    %v397 = vmax.f32 %v386, 0.0
    %v398 = vmax.f32 %v389, 0.0
    %v399 = vand.u32 2147483647, %v386
    %v400 = vand.u32 2147483647, %v389
    %v401 = vsub.f32 0.0, %v399
    %v402 = vsub.f32 0.0, %v400
    %v403 = vmul.f32 %v401, 1.442695
    %v404 = vpow.pop %v403
    %v405 = vmul.f32 %v402, 1.442695
    %v406 = vpow.pop %v405
    %v407 = vadd.f32 %v404, 1.0
    %v408 = vlog2.pop %v407
    %v409 = vmul.f32 %v408, 0.6931472
    %v410 = vmul.f32 -0.5, %v404
    %v411 = vadd.f32 %v410, 1.0
    %v412 = vmul.f32 %v411, %v404
    %v413 = vand.u32 2147483647, %v404
    %vm414 = vcmp.lt.f32.partialorder %v413, 0.0004427343
    %v415 = vsel %vm414, %v412, %v409
    %v416 = vadd.f32 %v406, 1.0
    %v417 = vlog2.pop %v416
    %v418 = vmul.f32 %v417, 0.6931472
    %v419 = vmul.f32 -0.5, %v406
    %v420 = vadd.f32 %v419, 1.0
    %v421 = vmul.f32 %v420, %v406
    %v422 = vand.u32 2147483647, %v406
    %vm423 = vcmp.lt.f32.partialorder %v422, 0.0004427343
    %v424 = vsel %vm423, %v421, %v418
    %v425 = vadd.f32 %v397, %v415
    %v426 = vadd.f32 %v398, %v424
    %v427 = vsel %vm396, %v425, %v386
    %v428 = vsel %vm396, %v426, %v389
    %v429 = vpack.c.bf16 %v428, %v427
    %v431 = vunpack.c.l.b16 %v429
    %v432 = vunpack.c.h.b16 %v429
    %v433 = vpack.c.b16 %v431, %v431
    %v434 = vpack.c.b16 %v432, %v432
    %437 = vst [vmem:[#allocation10] sm:$0xf] %v433
    %438 = vst [vmem:[#allocation10 + $0x4] sm:$0xf] %v434
    // Predicated region
    $region46: #{tpu_custom_call.1} parent=1 // pred_check
      _
    $region47: #{tpu_custom_call.1} parent=1 // pred_check_branch
      %440 = sbr.rel (0) target = $region49
    $region48: #{tpu_custom_call.1} parent=1 // pred_region
      %s442 = ssub.s32 128, 128
      %443 = vsyncadd [#allocation4], %s442
      %s444 = sshll.u32 [#allocation10], 4
      %s445 = int_to_ptr.vmem [resolvable:$true] %s444
      %450 = dma.vmem_to_hbm [thread:$0]  %s445, 128, %s7, [#allocation4], 64, 64, 4
    $region49: #{tpu_custom_call.1} parent=1 // pred_fallthru
      _
    // Predicated region
    $region50: #{tpu_custom_call.1} parent=1 // pred_check
      _
    $region51: #{tpu_custom_call.1} parent=1 // pred_check_branch
      %452 = sbr.rel (0) target = $region53
    $region52: #{tpu_custom_call.1} parent=1 // pred_region
      %453 = dma.done [#allocation4], 128
    $region53: #{tpu_custom_call.1} parent=1 // pred_fallthru
      _
    %454 = vsyncpa [#allocation3], 1
    %455 = vsyncpa [#allocation6], 1
    %456 = vsyncpa [#allocation9], 1
    %457 = vsyncpa [#allocation4], 1

</llo_original>
